<compile_context>
chip_gen: v7x
topology: tpu7x:2x2x1
jax: 0.10.0
libtpu: 0.0.40
codegen_flags: <defaults>
</compile_context>

<pallas_src>
from functools import partial

import jax
import jax.numpy as jnp
from jax.experimental import pallas as pl
from jax.experimental.pallas import tpu as pltpu

# ----------------------------- small config ----------------------------------
N_EMBD = 32                    # config.n_embd
N_HEAD = 4                     # num_heads
HEAD_SIZE = N_EMBD // N_HEAD   # head_size
BLOCK_SIZE = 8                 # config.block_size (max T)
LANE = 128
NEG_BIG = -1e30                # additive causal-mask bias (avoids -inf arithmetic)


def _round_up(x, m):
    return (x + m - 1) // m * m


def _pick_batch_block(B, target=8):
    """Batch-block size: up to `target` sequences per grid step, and (when
    possible) at least 2 grid steps so v7x megacore has something to shard."""
    bb = min(target, B)
    while B % bb:
        bb -= 1
    if bb == B and B > 1:
        bb = B // 2
        while B % bb:
            bb -= 1
    return max(bb, 1)


# ------------------------------- Pallas kernel --------------------------------
def mha_kernel(x_ref, wqkv_ref, bias_ref, wproj_ref, bproj_ref, out_ref,
               *, BB, T, C, H, HS, CP):
    rows = BB * T
    # (BB, T, C) block -> (rows, C); cast once for the MXU.
    x = x_ref[...].reshape(rows, C).astype(jnp.bfloat16)

    # Fused Q/K/V projection for all heads: one (rows, C) @ (C, 3C) MXU matmul.
    # 1/sqrt(HS) is already folded into the Q columns of wqkv.
    qkv = jnp.dot(x, wqkv_ref[...], preferred_element_type=jnp.float32)
    qkv_bf = qkv.astype(jnp.bfloat16)        # single cast; slices below reuse it

    # Hoisted: additive causal bias broadcast once (not per head).
    bias = jnp.broadcast_to(bias_ref[...].reshape(1, T, T), (BB, T, T))

    # Output accumulator starts from the (lane-dense, 128-wide) projection bias.
    wp = wproj_ref[...]                      # (C, CP) bf16, resident in VMEM
    acc = jnp.broadcast_to(bproj_ref[...], (rows, CP)).astype(jnp.float32)

    for h in range(H):                       # static unroll over heads (H=4)
        q = qkv_bf[:, h * HS:(h + 1) * HS].reshape(BB, T, HS)
        k = qkv_bf[:, C + h * HS:C + (h + 1) * HS].reshape(BB, T, HS)
        v = qkv_bf[:, 2 * C + h * HS:2 * C + (h + 1) * HS].reshape(BB, T, HS)

        # Scores + softmax in f32 (bf16 only feeds the MXU).
        s = jnp.einsum('btd,bsd->bts', q, k,
                       preferred_element_type=jnp.float32) + bias
        s = s - jnp.max(s, axis=-1, keepdims=True)
        p = jnp.exp(s)
        p = p * pl.reciprocal(jnp.sum(p, axis=-1, keepdims=True), approx=True)
        # TODO(synk): attention-weight dropout omitted (eval-mode identity)

        o = jnp.einsum('bts,bsd->btd', p.astype(jnp.bfloat16), v,
                       preferred_element_type=jnp.float32)

        # Head merge on the MXU: accumulate o_h @ wproj[h*HS:(h+1)*HS, :]
        # instead of lane-concatenating the heads.
        acc = acc + jnp.dot(o.reshape(rows, HS).astype(jnp.bfloat16),
                            wp[h * HS:(h + 1) * HS, :],
                            preferred_element_type=jnp.float32)

    # TODO(synk): projection dropout omitted (eval-mode identity)
    out_ref[...] = acc                       # one unmasked lane-dense (rows,128) store


# ------------------------------- wrappers --------------------------------------
def fuse_params(p):
    """One-time parameter prep: fuse per-head K/Q/V weights into one (C, 3C)
    bf16 matrix (attention scale folded into the Q columns), zero-pad the output
    projection to a lane-dense 128-wide bf16 weight / f32 bias, and precompute
    the additive causal bias."""
    C, H, HS = N_EMBD, N_HEAD, HEAD_SIZE
    scale = jnp.float32(HS) ** -0.5
    wq = jnp.transpose(p['wq'], (1, 0, 2)).reshape(C, H * HS) * scale
    wk = jnp.transpose(p['wk'], (1, 0, 2)).reshape(C, H * HS)
    wv = jnp.transpose(p['wv'], (1, 0, 2)).reshape(C, H * HS)
    wqkv = jnp.concatenate([wq, wk, wv], axis=1).astype(jnp.bfloat16)   # (C, 3C)

    cp = _round_up(C, LANE)
    wproj = jnp.zeros((C, cp), jnp.float32).at[:, :C].set(p['w_proj'])
    wproj = wproj.astype(jnp.bfloat16)
    bproj = jnp.zeros((1, cp), jnp.float32).at[:, :C].set(p['b_proj'])

    tri = jnp.tril(jnp.ones((BLOCK_SIZE, BLOCK_SIZE), jnp.bool_))
    bias = jnp.where(tri, 0.0, NEG_BIG).astype(jnp.float32)             # (Tmax, Tmax)

    return {'wqkv': wqkv, 'wproj': wproj, 'bproj': bproj, 'bias': bias}


def multi_head_attention(x, fp):
    """Pallas-backed MultiHeadAttention.forward(x) -> (B, T, C)."""
    B, T, C = x.shape
    CP = fp['wproj'].shape[1]
    BB = _pick_batch_block(B)
    grid = (B // BB,)

    out = pl.pallas_call(
        partial(mha_kernel, BB=BB, T=T, C=C, H=N_HEAD, HS=HEAD_SIZE, CP=CP),
        out_shape=jax.ShapeDtypeStruct((B * T, CP), jnp.float32),
        grid_spec=pltpu.PrefetchScalarGridSpec(
            num_scalar_prefetch=0,
            grid=grid,
            in_specs=[
                pl.BlockSpec((BB, T, C), lambda b: (b, 0, 0)),           # x batch block
                pl.BlockSpec(tuple(fp['wqkv'].shape), lambda b: (0, 0)),  # resident weights
                pl.BlockSpec((T, T), lambda b: (0, 0)),                   # causal bias
                pl.BlockSpec(tuple(fp['wproj'].shape), lambda b: (0, 0)),
                pl.BlockSpec(tuple(fp['bproj'].shape), lambda b: (0, 0)),
            ],
            out_specs=pl.BlockSpec((BB * T, CP), lambda b: (b, 0)),
        ),
        compiler_params=pltpu.CompilerParams(
            dimension_semantics=("parallel",),     # shardable across TCs on v7x
            vmem_limit_bytes=32 * 1024 * 1024,
        ),
    )(x, fp['wqkv'], fp['bias'][:T, :T], fp['wproj'], fp['bproj'])

    # Layout plumbing outside the kernel: drop the zero lane padding.
    return out[:, :C].reshape(B, T, C)


# ------------------------------- init & reference ------------------------------
def init_params(key):
    """Per-head bias-free K/Q/V Linears (stored pre-transposed as (C, HS) so
    q_h = x @ wq[h]) plus the (C, C) output projection with bias — matching the
    PyTorch module structure."""
    def nrm(k, shape, s=0.02):
        return s * jax.random.normal(k, shape, jnp.float32)

    kq, kk, kv, kp, kb = jax.random.split(key, 5)
    return {
        'wq': nrm(kq, (N_HEAD, N_EMBD, HEAD_SIZE)),
        'wk': nrm(kk, (N_HEAD, N_EMBD, HEAD_SIZE)),
        'wv': nrm(kv, (N_HEAD, N_EMBD, HEAD_SIZE)),
        'w_proj': nrm(kp, (N_EMBD, N_EMBD)),
        'b_proj': nrm(kb, (N_EMBD,)),
    }


def mha_ref(x, p):
    """Pure-JAX reference with PyTorch semantics (per-head f32 weights, exact
    scale, -inf masked_fill + softmax, concat, projection + bias)."""
    B, T, C = x.shape
    scale = HEAD_SIZE ** -0.5
    tril = jnp.tril(jnp.ones((T, T), jnp.bool_))[None]
    outs = []
    for h in range(N_HEAD):
        q = x @ p['wq'][h]
        k = x @ p['wk'][h]
        v = x @ p['wv'][h]
        wei = jnp.einsum('btd,bsd->bts', q, k) * scale
        wei = jnp.where(tril, wei, -jnp.inf)
        wei = jax.nn.softmax(wei, axis=-1)
        outs.append(jnp.einsum('bts,bsd->btd', wei, v))
    cat = jnp.concatenate(outs, axis=-1)
    return cat @ p['w_proj'] + p['b_proj']


# ----------------------------------- main ---------------------------------------
if __name__ == "__main__":
    key = jax.random.PRNGKey(0)
    pkey, xkey, xkey2 = jax.random.split(key, 3)
    params = init_params(pkey)
    fused = fuse_params(params)

    mha = jax.jit(multi_head_attention)

    # Small shape implied by the module: B=2, T=block_size=8, C=n_embd=32.
    B, T = 2, BLOCK_SIZE
    x = jax.random.normal(xkey, (B, T, N_EMBD), jnp.float32)
    out = jax.block_until_ready(mha(x, fused))
    assert out.shape == (B, T, N_EMBD) and out.dtype == jnp.float32
    ref = jax.block_until_ready(mha_ref(x, params))
    # tolerance accounts for bf16 MXU operands + approx EUP reciprocal + scale folding
    assert jnp.allclose(out, ref, atol=2e-3, rtol=2e-2), "mismatch vs reference (B=2)"

    # Larger batch in a single launch (512 rows): amortizes the fixed pallas_call
    # cost and gives the parallel grid >= 2 steps for v7x's second TensorCore.
    B2 = 64
    x2 = jax.random.normal(xkey2, (B2, T, N_EMBD), jnp.float32)
    out2 = jax.block_until_ready(mha(x2, fused))
    ref2 = jax.block_until_ready(mha_ref(x2, params))
    assert jnp.allclose(out2, ref2, atol=2e-3, rtol=2e-2), "mismatch vs reference (B=64)"

    print("KERNEL_OK")
</pallas_src>

<mosaic_0001>
module attributes {stable_mosaic.version = 11 : i64} {
  func.func @mha_kernel(%arg0: i32, %arg1: memref<1x8x32xf32, #tpu.memory_space<vmem>>, %arg2: memref<32x96xbf16, #tpu.memory_space<vmem>>, %arg3: memref<8x8xf32, #tpu.memory_space<vmem>>, %arg4: memref<32x128xbf16, #tpu.memory_space<vmem>>, %arg5: memref<1x128xf32, #tpu.memory_space<vmem>>, %arg6: memref<8x128xf32, #tpu.memory_space<vmem>>) attributes {dimension_semantics = [#tpu.dimension_semantics<parallel>], iteration_bounds = array<i64: 2>, scalar_prefetch = 0 : i64, scratch_operands = 0 : i64, tpu.core_type = #tpu.core_type<tc>, window_params = [{transform_indices = @transform_0, window_bounds = array<i64: 1, 8, 32>}, {pipeline_mode = #tpu.pipeline_mode<synchronous>, transform_indices = @transform_1, window_bounds = array<i64: 32, 96>}, {pipeline_mode = #tpu.pipeline_mode<synchronous>, transform_indices = @transform_2, window_bounds = array<i64: 8, 8>}, {pipeline_mode = #tpu.pipeline_mode<synchronous>, transform_indices = @transform_3, window_bounds = array<i64: 32, 128>}, {pipeline_mode = #tpu.pipeline_mode<synchronous>, transform_indices = @transform_4, window_bounds = array<i64: 1, 128>}, {transform_indices = @transform_5, window_bounds = array<i64: 8, 128>}]} {
    %c0 = arith.constant 0 : index
    %c0_0 = arith.constant 0 : index
    %c0_1 = arith.constant 0 : index
    %0 = vector.load %arg1[%c0, %c0_0, %c0_1] : memref<1x8x32xf32, #tpu.memory_space<vmem>>, vector<1x8x32xf32>
    %1 = vector.shape_cast %0 : vector<1x8x32xf32> to vector<8x32xf32>
    %2 = arith.truncf %1 : vector<8x32xf32> to vector<8x32xbf16>
    %c0_2 = arith.constant 0 : index
    %c0_3 = arith.constant 0 : index
    %3 = vector.load %arg2[%c0_2, %c0_3] : memref<32x96xbf16, #tpu.memory_space<vmem>>, vector<32x96xbf16>
    %cst = arith.constant dense<0.000000e+00> : vector<8x96xf32>
    %4 = tpu.matmul %2, %3, %cst {dimension_numbers = #tpu.dot_dimension_numbers<[1], [0], [0], [1], [0, 0, 1, 1], [], []>} : vector<8x32xbf16>, vector<32x96xbf16>, vector<8x96xf32> -> vector<8x96xf32>
    %5 = arith.truncf %4 : vector<8x96xf32> to vector<8x96xbf16>
    %c0_4 = arith.constant 0 : index
    %c0_5 = arith.constant 0 : index
    %6 = vector.load %arg3[%c0_4, %c0_5] : memref<8x8xf32, #tpu.memory_space<vmem>>, vector<8x8xf32>
    %7 = vector.shape_cast %6 : vector<8x8xf32> to vector<1x8x8xf32>
    %c0_6 = arith.constant 0 : index
    %c0_7 = arith.constant 0 : index
    %8 = vector.load %arg4[%c0_6, %c0_7] : memref<32x128xbf16, #tpu.memory_space<vmem>>, vector<32x128xbf16>
    %c0_8 = arith.constant 0 : index
    %c0_9 = arith.constant 0 : index
    %9 = vector.load %arg5[%c0_8, %c0_9] : memref<1x128xf32, #tpu.memory_space<vmem>>, vector<1x128xf32>
    %10 = vector.shape_cast %9 : vector<1x128xf32> to vector<1x128xf32>
    %11 = vector.broadcast %10 : vector<1x128xf32> to vector<8x128xf32>
    %12 = vector.extract_strided_slice %5 {offsets = [0, 0], sizes = [8, 8], strides = [1, 1]} : vector<8x96xbf16> to vector<8x8xbf16>
    %13 = vector.shape_cast %12 : vector<8x8xbf16> to vector<1x8x8xbf16>
    %14 = vector.extract_strided_slice %5 {offsets = [0, 32], sizes = [8, 8], strides = [1, 1]} : vector<8x96xbf16> to vector<8x8xbf16>
    %15 = vector.shape_cast %14 : vector<8x8xbf16> to vector<1x8x8xbf16>
    %16 = vector.extract_strided_slice %5 {offsets = [0, 64], sizes = [8, 8], strides = [1, 1]} : vector<8x96xbf16> to vector<8x8xbf16>
    %17 = vector.shape_cast %16 : vector<8x8xbf16> to vector<1x8x8xbf16>
    "tpu.trace_start"() <{level = 10 : i32, message = "btd,bsd->bts"}> : () -> ()
    %cst_10 = arith.constant dense<0.000000e+00> : vector<1x8x8xf32>
    %18 = tpu.matmul %13, %15, %cst_10 {dimension_numbers = #tpu.dot_dimension_numbers<[2], [2], [1], [1], [0, 0, 0, 1, 1, 1], [0], [0]>} : vector<1x8x8xbf16>, vector<1x8x8xbf16>, vector<1x8x8xf32> -> vector<1x8x8xf32>
    "tpu.trace_stop"() : () -> ()
    %19 = arith.addf %18, %7 : vector<1x8x8xf32>
    %cst_11 = arith.constant dense<0xFF800000> : vector<1x8xf32>
    %20 = vector.multi_reduction <maximumf>, %19, %cst_11 [2] : vector<1x8x8xf32> to vector<1x8xf32>
    %21 = vector.shape_cast %20 : vector<1x8xf32> to vector<1x8x1xf32>
    %22 = vector.broadcast %21 : vector<1x8x1xf32> to vector<1x8x8xf32>
    %23 = arith.subf %19, %22 : vector<1x8x8xf32>
    %24 = math.exp %23 : vector<1x8x8xf32>
    %cst_12 = arith.constant dense<0.000000e+00> : vector<1x8xf32>
    %25 = vector.multi_reduction <add>, %24, %cst_12 [2] : vector<1x8x8xf32> to vector<1x8xf32>
    %26 = vector.shape_cast %25 : vector<1x8xf32> to vector<1x8x1xf32>
    %27 = tpu.reciprocal %26 {approx = true} : vector<1x8x1xf32> -> vector<1x8x1xf32>
    %28 = vector.broadcast %27 : vector<1x8x1xf32> to vector<1x8x8xf32>
    %29 = arith.mulf %24, %28 : vector<1x8x8xf32>
    %30 = arith.truncf %29 : vector<1x8x8xf32> to vector<1x8x8xbf16>
    "tpu.trace_start"() <{level = 10 : i32, message = "bts,bsd->btd"}> : () -> ()
    %cst_13 = arith.constant dense<0.000000e+00> : vector<1x8x8xf32>
    %31 = tpu.matmul %30, %17, %cst_13 {dimension_numbers = #tpu.dot_dimension_numbers<[2], [1], [1], [2], [0, 0, 0, 1, 1, 2], [0], [0]>} : vector<1x8x8xbf16>, vector<1x8x8xbf16>, vector<1x8x8xf32> -> vector<1x8x8xf32>
    "tpu.trace_stop"() : () -> ()
    %32 = vector.shape_cast %31 : vector<1x8x8xf32> to vector<8x8xf32>
    %33 = arith.truncf %32 : vector<8x8xf32> to vector<8x8xbf16>
    %34 = vector.extract_strided_slice %8 {offsets = [0, 0], sizes = [8, 128], strides = [1, 1]} : vector<32x128xbf16> to vector<8x128xbf16>
    %cst_14 = arith.constant dense<0.000000e+00> : vector<8x128xf32>
    %35 = tpu.matmul %33, %34, %cst_14 {dimension_numbers = #tpu.dot_dimension_numbers<[1], [0], [0], [1], [0, 0, 1, 1], [], []>} : vector<8x8xbf16>, vector<8x128xbf16>, vector<8x128xf32> -> vector<8x128xf32>
    %36 = arith.addf %11, %35 : vector<8x128xf32>
    %37 = vector.extract_strided_slice %5 {offsets = [0, 8], sizes = [8, 8], strides = [1, 1]} : vector<8x96xbf16> to vector<8x8xbf16>
    %38 = vector.shape_cast %37 : vector<8x8xbf16> to vector<1x8x8xbf16>
    %39 = vector.extract_strided_slice %5 {offsets = [0, 40], sizes = [8, 8], strides = [1, 1]} : vector<8x96xbf16> to vector<8x8xbf16>
    %40 = vector.shape_cast %39 : vector<8x8xbf16> to vector<1x8x8xbf16>
    %41 = vector.extract_strided_slice %5 {offsets = [0, 72], sizes = [8, 8], strides = [1, 1]} : vector<8x96xbf16> to vector<8x8xbf16>
    %42 = vector.shape_cast %41 : vector<8x8xbf16> to vector<1x8x8xbf16>
    "tpu.trace_start"() <{level = 10 : i32, message = "btd,bsd->bts"}> : () -> ()
    %cst_15 = arith.constant dense<0.000000e+00> : vector<1x8x8xf32>
    %43 = tpu.matmul %38, %40, %cst_15 {dimension_numbers = #tpu.dot_dimension_numbers<[2], [2], [1], [1], [0, 0, 0, 1, 1, 1], [0], [0]>} : vector<1x8x8xbf16>, vector<1x8x8xbf16>, vector<1x8x8xf32> -> vector<1x8x8xf32>
    "tpu.trace_stop"() : () -> ()
    %44 = arith.addf %43, %7 : vector<1x8x8xf32>
    %cst_16 = arith.constant dense<0xFF800000> : vector<1x8xf32>
    %45 = vector.multi_reduction <maximumf>, %44, %cst_16 [2] : vector<1x8x8xf32> to vector<1x8xf32>
    %46 = vector.shape_cast %45 : vector<1x8xf32> to vector<1x8x1xf32>
    %47 = vector.broadcast %46 : vector<1x8x1xf32> to vector<1x8x8xf32>
    %48 = arith.subf %44, %47 : vector<1x8x8xf32>
    %49 = math.exp %48 : vector<1x8x8xf32>
    %cst_17 = arith.constant dense<0.000000e+00> : vector<1x8xf32>
    %50 = vector.multi_reduction <add>, %49, %cst_17 [2] : vector<1x8x8xf32> to vector<1x8xf32>
    %51 = vector.shape_cast %50 : vector<1x8xf32> to vector<1x8x1xf32>
    %52 = tpu.reciprocal %51 {approx = true} : vector<1x8x1xf32> -> vector<1x8x1xf32>
    %53 = vector.broadcast %52 : vector<1x8x1xf32> to vector<1x8x8xf32>
    %54 = arith.mulf %49, %53 : vector<1x8x8xf32>
    %55 = arith.truncf %54 : vector<1x8x8xf32> to vector<1x8x8xbf16>
    "tpu.trace_start"() <{level = 10 : i32, message = "bts,bsd->btd"}> : () -> ()
    %cst_18 = arith.constant dense<0.000000e+00> : vector<1x8x8xf32>
    %56 = tpu.matmul %55, %42, %cst_18 {dimension_numbers = #tpu.dot_dimension_numbers<[2], [1], [1], [2], [0, 0, 0, 1, 1, 2], [0], [0]>} : vector<1x8x8xbf16>, vector<1x8x8xbf16>, vector<1x8x8xf32> -> vector<1x8x8xf32>
    "tpu.trace_stop"() : () -> ()
    %57 = vector.shape_cast %56 : vector<1x8x8xf32> to vector<8x8xf32>
    %58 = arith.truncf %57 : vector<8x8xf32> to vector<8x8xbf16>
    %59 = vector.extract_strided_slice %8 {offsets = [8, 0], sizes = [8, 128], strides = [1, 1]} : vector<32x128xbf16> to vector<8x128xbf16>
    %cst_19 = arith.constant dense<0.000000e+00> : vector<8x128xf32>
    %60 = tpu.matmul %58, %59, %cst_19 {dimension_numbers = #tpu.dot_dimension_numbers<[1], [0], [0], [1], [0, 0, 1, 1], [], []>} : vector<8x8xbf16>, vector<8x128xbf16>, vector<8x128xf32> -> vector<8x128xf32>
    %61 = arith.addf %36, %60 : vector<8x128xf32>
    %62 = vector.extract_strided_slice %5 {offsets = [0, 16], sizes = [8, 8], strides = [1, 1]} : vector<8x96xbf16> to vector<8x8xbf16>
    %63 = vector.shape_cast %62 : vector<8x8xbf16> to vector<1x8x8xbf16>
    %64 = vector.extract_strided_slice %5 {offsets = [0, 48], sizes = [8, 8], strides = [1, 1]} : vector<8x96xbf16> to vector<8x8xbf16>
    %65 = vector.shape_cast %64 : vector<8x8xbf16> to vector<1x8x8xbf16>
    %66 = vector.extract_strided_slice %5 {offsets = [0, 80], sizes = [8, 8], strides = [1, 1]} : vector<8x96xbf16> to vector<8x8xbf16>
    %67 = vector.shape_cast %66 : vector<8x8xbf16> to vector<1x8x8xbf16>
    "tpu.trace_start"() <{level = 10 : i32, message = "btd,bsd->bts"}> : () -> ()
    %cst_20 = arith.constant dense<0.000000e+00> : vector<1x8x8xf32>
    %68 = tpu.matmul %63, %65, %cst_20 {dimension_numbers = #tpu.dot_dimension_numbers<[2], [2], [1], [1], [0, 0, 0, 1, 1, 1], [0], [0]>} : vector<1x8x8xbf16>, vector<1x8x8xbf16>, vector<1x8x8xf32> -> vector<1x8x8xf32>
    "tpu.trace_stop"() : () -> ()
    %69 = arith.addf %68, %7 : vector<1x8x8xf32>
    %cst_21 = arith.constant dense<0xFF800000> : vector<1x8xf32>
    %70 = vector.multi_reduction <maximumf>, %69, %cst_21 [2] : vector<1x8x8xf32> to vector<1x8xf32>
    %71 = vector.shape_cast %70 : vector<1x8xf32> to vector<1x8x1xf32>
    %72 = vector.broadcast %71 : vector<1x8x1xf32> to vector<1x8x8xf32>
    %73 = arith.subf %69, %72 : vector<1x8x8xf32>
    %74 = math.exp %73 : vector<1x8x8xf32>
    %cst_22 = arith.constant dense<0.000000e+00> : vector<1x8xf32>
    %75 = vector.multi_reduction <add>, %74, %cst_22 [2] : vector<1x8x8xf32> to vector<1x8xf32>
    %76 = vector.shape_cast %75 : vector<1x8xf32> to vector<1x8x1xf32>
    %77 = tpu.reciprocal %76 {approx = true} : vector<1x8x1xf32> -> vector<1x8x1xf32>
    %78 = vector.broadcast %77 : vector<1x8x1xf32> to vector<1x8x8xf32>
    %79 = arith.mulf %74, %78 : vector<1x8x8xf32>
    %80 = arith.truncf %79 : vector<1x8x8xf32> to vector<1x8x8xbf16>
    "tpu.trace_start"() <{level = 10 : i32, message = "bts,bsd->btd"}> : () -> ()
    %cst_23 = arith.constant dense<0.000000e+00> : vector<1x8x8xf32>
    %81 = tpu.matmul %80, %67, %cst_23 {dimension_numbers = #tpu.dot_dimension_numbers<[2], [1], [1], [2], [0, 0, 0, 1, 1, 2], [0], [0]>} : vector<1x8x8xbf16>, vector<1x8x8xbf16>, vector<1x8x8xf32> -> vector<1x8x8xf32>
    "tpu.trace_stop"() : () -> ()
    %82 = vector.shape_cast %81 : vector<1x8x8xf32> to vector<8x8xf32>
    %83 = arith.truncf %82 : vector<8x8xf32> to vector<8x8xbf16>
    %84 = vector.extract_strided_slice %8 {offsets = [16, 0], sizes = [8, 128], strides = [1, 1]} : vector<32x128xbf16> to vector<8x128xbf16>
    %cst_24 = arith.constant dense<0.000000e+00> : vector<8x128xf32>
    %85 = tpu.matmul %83, %84, %cst_24 {dimension_numbers = #tpu.dot_dimension_numbers<[1], [0], [0], [1], [0, 0, 1, 1], [], []>} : vector<8x8xbf16>, vector<8x128xbf16>, vector<8x128xf32> -> vector<8x128xf32>
    %86 = arith.addf %61, %85 : vector<8x128xf32>
    %87 = vector.extract_strided_slice %5 {offsets = [0, 24], sizes = [8, 8], strides = [1, 1]} : vector<8x96xbf16> to vector<8x8xbf16>
    %88 = vector.shape_cast %87 : vector<8x8xbf16> to vector<1x8x8xbf16>
    %89 = vector.extract_strided_slice %5 {offsets = [0, 56], sizes = [8, 8], strides = [1, 1]} : vector<8x96xbf16> to vector<8x8xbf16>
    %90 = vector.shape_cast %89 : vector<8x8xbf16> to vector<1x8x8xbf16>
    %91 = vector.extract_strided_slice %5 {offsets = [0, 88], sizes = [8, 8], strides = [1, 1]} : vector<8x96xbf16> to vector<8x8xbf16>
    %92 = vector.shape_cast %91 : vector<8x8xbf16> to vector<1x8x8xbf16>
    "tpu.trace_start"() <{level = 10 : i32, message = "btd,bsd->bts"}> : () -> ()
    %cst_25 = arith.constant dense<0.000000e+00> : vector<1x8x8xf32>
    %93 = tpu.matmul %88, %90, %cst_25 {dimension_numbers = #tpu.dot_dimension_numbers<[2], [2], [1], [1], [0, 0, 0, 1, 1, 1], [0], [0]>} : vector<1x8x8xbf16>, vector<1x8x8xbf16>, vector<1x8x8xf32> -> vector<1x8x8xf32>
    "tpu.trace_stop"() : () -> ()
    %94 = arith.addf %93, %7 : vector<1x8x8xf32>
    %cst_26 = arith.constant dense<0xFF800000> : vector<1x8xf32>
    %95 = vector.multi_reduction <maximumf>, %94, %cst_26 [2] : vector<1x8x8xf32> to vector<1x8xf32>
    %96 = vector.shape_cast %95 : vector<1x8xf32> to vector<1x8x1xf32>
    %97 = vector.broadcast %96 : vector<1x8x1xf32> to vector<1x8x8xf32>
    %98 = arith.subf %94, %97 : vector<1x8x8xf32>
    %99 = math.exp %98 : vector<1x8x8xf32>
    %cst_27 = arith.constant dense<0.000000e+00> : vector<1x8xf32>
    %100 = vector.multi_reduction <add>, %99, %cst_27 [2] : vector<1x8x8xf32> to vector<1x8xf32>
    %101 = vector.shape_cast %100 : vector<1x8xf32> to vector<1x8x1xf32>
    %102 = tpu.reciprocal %101 {approx = true} : vector<1x8x1xf32> -> vector<1x8x1xf32>
    %103 = vector.broadcast %102 : vector<1x8x1xf32> to vector<1x8x8xf32>
    %104 = arith.mulf %99, %103 : vector<1x8x8xf32>
    %105 = arith.truncf %104 : vector<1x8x8xf32> to vector<1x8x8xbf16>
    "tpu.trace_start"() <{level = 10 : i32, message = "bts,bsd->btd"}> : () -> ()
    %cst_28 = arith.constant dense<0.000000e+00> : vector<1x8x8xf32>
    %106 = tpu.matmul %105, %92, %cst_28 {dimension_numbers = #tpu.dot_dimension_numbers<[2], [1], [1], [2], [0, 0, 0, 1, 1, 2], [0], [0]>} : vector<1x8x8xbf16>, vector<1x8x8xbf16>, vector<1x8x8xf32> -> vector<1x8x8xf32>
    "tpu.trace_stop"() : () -> ()
    %107 = vector.shape_cast %106 : vector<1x8x8xf32> to vector<8x8xf32>
    %108 = arith.truncf %107 : vector<8x8xf32> to vector<8x8xbf16>
    %109 = vector.extract_strided_slice %8 {offsets = [24, 0], sizes = [8, 128], strides = [1, 1]} : vector<32x128xbf16> to vector<8x128xbf16>
    %cst_29 = arith.constant dense<0.000000e+00> : vector<8x128xf32>
    %110 = tpu.matmul %108, %109, %cst_29 {dimension_numbers = #tpu.dot_dimension_numbers<[1], [0], [0], [1], [0, 0, 1, 1], [], []>} : vector<8x8xbf16>, vector<8x128xbf16>, vector<8x128xf32> -> vector<8x128xf32>
    %111 = arith.addf %86, %110 : vector<8x128xf32>
    %c0_30 = arith.constant 0 : index
    %c0_31 = arith.constant 0 : index
    %112 = vector.load %arg6[%c0_30, %c0_31] : memref<8x128xf32, #tpu.memory_space<vmem>>, vector<8x128xf32>
    tpu.vector_store %arg6[%c0_30, %c0_31], %111 {strides = array<i32>} : memref<8x128xf32, #tpu.memory_space<vmem>>, vector<8x128xf32>,
    return
  }
  func.func @transform_0(%arg0: i32) -> (i32, i32, i32) {
    %c0_i32 = arith.constant 0 : i32
    %c0_i32_0 = arith.constant 0 : i32
    %c0_i32_1 = arith.constant 0 : i32
    return %arg0, %c0_i32, %c0_i32_0 : i32, i32, i32
  }
  func.func @transform_1(%arg0: i32) -> (i32, i32) {
    %c0_i32 = arith.constant 0 : i32
    %c0_i32_0 = arith.constant 0 : i32
    %c0_i32_1 = arith.constant 0 : i32
    return %c0_i32, %c0_i32_0 : i32, i32
  }
  func.func @transform_2(%arg0: i32) -> (i32, i32) {
    %c0_i32 = arith.constant 0 : i32
    %c0_i32_0 = arith.constant 0 : i32
    %c0_i32_1 = arith.constant 0 : i32
    return %c0_i32, %c0_i32_0 : i32, i32
  }
  func.func @transform_3(%arg0: i32) -> (i32, i32) {
    %c0_i32 = arith.constant 0 : i32
    %c0_i32_0 = arith.constant 0 : i32
    %c0_i32_1 = arith.constant 0 : i32
    return %c0_i32, %c0_i32_0 : i32, i32
  }
  func.func @transform_4(%arg0: i32) -> (i32, i32) {
    %c0_i32 = arith.constant 0 : i32
    %c0_i32_0 = arith.constant 0 : i32
    %c0_i32_1 = arith.constant 0 : i32
    return %c0_i32, %c0_i32_0 : i32, i32
  }
  func.func @transform_5(%arg0: i32) -> (i32, i32) {
    %c0_i32 = arith.constant 0 : i32
    %c0_i32_0 = arith.constant 0 : i32
    return %arg0, %c0_i32 : i32, i32
  }
}

</mosaic_0001>

<llo_original>
// kernel: multi_head_attention.1
$region0: #{multi_head_attention.1}
  #allocation0 [shape = 'u32[]', space=smem, size = 0x4, offset = 0x4, fixed_abs, tag = 'smem constant byte address 0x4 - core index']
  #allocation1 [shape = 'u32[144,128]{1,0:T(1,128)}', space=vmem, size = 0x12000, scoped, tag = 'internal scratch']
  %s0 = inlined_call_operand.hbm [shape: f32[2,8,32], index: 0, kind: input, shape index: {}]
  %s1 = inlined_call_operand.hbm [shape: bf16[32,96], index: 1, kind: input, shape index: {}]
  %s2 = inlined_call_operand.hbm [shape: f32[8,8], index: 2, kind: input, shape index: {}]
  %s3 = inlined_call_operand.hbm [shape: bf16[32,128], index: 3, kind: input, shape index: {}]
  %s4 = inlined_call_operand.vmem [shape: f32[1,128], index: 4, kind: input, shape index: {}]
  %s5 = inlined_call_operand.vmem [shape: f32[16,128], index: 5, kind: output, shape index: {}]
  %s6 = sld [smem:[#allocation0]]
  $region69: #{multi_head_attention.1} parent=0
    _
  %s8 = ssub.s32 1, %s6
  %s9 = scalar_select 0, %s8, %s6
  $region1: #{multi_head_attention.1} parent=0
    #allocation2 [shape = 'u8[8192]{0}', space=vmem, size = 0x2000, scoped, tag = 'input window, operand 0']
    #allocation3 [shape = 's32[2]{0}', space=sflag, size = 0x8, scoped, tag = 'scoped memory for multi_head_attention.1']
    #allocation4 [shape = 'u8[8192]{0}', space=vmem, size = 0x2000, scoped, tag = 'input window, operand 1, single buffered']
    #allocation5 [shape = 's32[1]{0}', space=sflag, size = 0x4, scoped, tag = 'scoped memory for multi_head_attention.1']
    #allocation6 [shape = 'u8[4096]{0}', space=vmem, size = 0x1000, scoped, tag = 'input window, operand 2, single buffered']
    #allocation7 [shape = 'u8[8192]{0}', space=vmem, size = 0x2000, scoped, tag = 'input window, operand 3, single buffered']
    #allocation8 [shape = 's32[1]{0}', space=sflag, size = 0x4, scoped, tag = 'scoped memory for multi_head_attention.1']
    %10 = vsyncpa [#allocation3], 0
    %s11 = scalar_lea.sflag [#allocation3], 1
    %12 = vsyncpa %s11, 0
    %13 = vsyncpa [#allocation5], 0
    %14 = vsyncpa [#allocation8], 0
    loop: start=0, step=1, limit=4
    $region2: #{multi_head_attention.1} parent=1 // loop_pre_header
      _
    $region3: #{multi_head_attention.1} parent=1 // loop_header
      %s16 = sphi 0, %s20
      %p17 = scmp.ge.s32.totalorder %s16, 4
      %s26 = sphi 0, %s28
      %s29 = sphi 0, %s26
      %s30 = sphi 0, %s29
      %s46 = sphi 0, %s30
      %s50 = sphi 0, %s50
      %s52 = sphi 0, %s50
      %s53 = sphi 0, %s52
      %s67 = sphi 0, %s53
      %s71 = sphi 0, %s71
      %s73 = sphi 0, %s71
      %s74 = sphi 0, %s73
      %s88 = sphi 0, %s74
      %s92 = sphi 0, %s92
      %s94 = sphi 0, %s92
      %s95 = sphi 0, %s94
      %s109 = sphi 0, %s95
      %s113 = sphi 0, %s113
      %s115 = sphi 0, %s113
      %s116 = sphi 0, %s115
      %s130 = sphi 0, %s116
      %s136 = sphi 0, %s138
      %s139 = sphi 0, %s136
      %s140 = sphi 0, %s139
      %s156 = sphi 0, %s140
    $region4: #{multi_head_attention.1} parent=1 // loop_header_branch
      %19 = sbr.rel (%p17) target = $region8
    $region5: #{multi_head_attention.1} parent=1 // loop_body
      %s21 = ssub.s32 %s16, 1
      %s22 = ssub.s32 %s16, 2
      %s23 = sadd.s32 %s16, 1
      %s24 = ssub.s32 %s16, %s23
      %p25 = scmp.eq.s32.totalorder %s24, 0
      %s27 = sadd.s32 %s26, 1
      %s28 = scalar_select %p25, %s26, %s27
      %p31 = pneg %p25
      %p32 = scmp.eq.s32.totalorder %s16, 1
      %p33 = por %p31, %p32
      %p34 = scmp.ne.s32.totalorder %s26, %s29
      %p35 = scmp.eq.s32.totalorder %s16, 0
      %p36 = por %p34, %p35
      %p37 = scmp.ne.s32.totalorder %s26, %s29
      %p38 = scmp.eq.s32.totalorder %s21, 1
      %p39 = por %p37, %p38
      %p40 = scmp.ne.s32.totalorder %s29, %s30
      %p41 = scmp.eq.s32.totalorder %s21, 0
      %p42 = por %p40, %p41
      %p43 = scmp.ne.s32.totalorder %s29, %s30
      %p44 = scmp.eq.s32.totalorder %s22, 1
      %p45 = por %p43, %p44
      %p47 = scmp.ne.s32.totalorder %s30, %s46
      %p48 = scmp.eq.s32.totalorder %s22, 0
      %p49 = por %p47, %p48
      %s51 = sadd.s32 %s50, 1
      %p54 = scmp.eq.s32.totalorder %s16, 1
      %p55 = scmp.ne.s32.totalorder %s50, %s52
      %p56 = scmp.eq.s32.totalorder %s16, 0
      %p57 = por %p55, %p56
      %p58 = scmp.ne.s32.totalorder %s50, %s52
      %p59 = scmp.eq.s32.totalorder %s21, 1
      %p60 = por %p58, %p59
      %p61 = scmp.ne.s32.totalorder %s52, %s53
      %p62 = scmp.eq.s32.totalorder %s21, 0
      %p63 = por %p61, %p62
      %p64 = scmp.ne.s32.totalorder %s52, %s53
      %p65 = scmp.eq.s32.totalorder %s22, 1
      %p66 = por %p64, %p65
      %p68 = scmp.ne.s32.totalorder %s53, %s67
      %p69 = scmp.eq.s32.totalorder %s22, 0
      %p70 = por %p68, %p69
      %s72 = sadd.s32 %s71, 1
      %p75 = scmp.eq.s32.totalorder %s16, 1
      %p76 = scmp.ne.s32.totalorder %s71, %s73
      %p77 = scmp.eq.s32.totalorder %s16, 0
      %p78 = por %p76, %p77
      %p79 = scmp.ne.s32.totalorder %s71, %s73
      %p80 = scmp.eq.s32.totalorder %s21, 1
      %p81 = por %p79, %p80
      %p82 = scmp.ne.s32.totalorder %s73, %s74
      %p83 = scmp.eq.s32.totalorder %s21, 0
      %p84 = por %p82, %p83
      %p85 = scmp.ne.s32.totalorder %s73, %s74
      %p86 = scmp.eq.s32.totalorder %s22, 1
      %p87 = por %p85, %p86
      %p89 = scmp.ne.s32.totalorder %s74, %s88
      %p90 = scmp.eq.s32.totalorder %s22, 0
      %p91 = por %p89, %p90
      %s93 = sadd.s32 %s92, 1
      %p96 = scmp.eq.s32.totalorder %s16, 1
      %p97 = scmp.ne.s32.totalorder %s92, %s94
      %p98 = scmp.eq.s32.totalorder %s16, 0
      %p99 = por %p97, %p98
      %p100 = scmp.ne.s32.totalorder %s92, %s94
      %p101 = scmp.eq.s32.totalorder %s21, 1
      %p102 = por %p100, %p101
      %p103 = scmp.ne.s32.totalorder %s94, %s95
      %p104 = scmp.eq.s32.totalorder %s21, 0
      %p105 = por %p103, %p104
      %p106 = scmp.ne.s32.totalorder %s94, %s95
      %p107 = scmp.eq.s32.totalorder %s22, 1
      %p108 = por %p106, %p107
      %p110 = scmp.ne.s32.totalorder %s95, %s109
      %p111 = scmp.eq.s32.totalorder %s22, 0
      %p112 = por %p110, %p111
      %s114 = sadd.s32 %s113, 1
      %p117 = scmp.eq.s32.totalorder %s16, 1
      %p118 = scmp.ne.s32.totalorder %s113, %s115
      %p119 = scmp.eq.s32.totalorder %s16, 0
      %p120 = por %p118, %p119
      %p121 = scmp.ne.s32.totalorder %s113, %s115
      %p122 = scmp.eq.s32.totalorder %s21, 1
      %p123 = por %p121, %p122
      %p124 = scmp.ne.s32.totalorder %s115, %s116
      %p125 = scmp.eq.s32.totalorder %s21, 0
      %p126 = por %p124, %p125
      %p127 = scmp.ne.s32.totalorder %s115, %s116
      %p128 = scmp.eq.s32.totalorder %s22, 1
      %p129 = por %p127, %p128
      %p131 = scmp.ne.s32.totalorder %s116, %s130
      %p132 = scmp.eq.s32.totalorder %s22, 0
      %p133 = por %p131, %p132
      %s134 = ssub.s32 %s16, %s23
      %p135 = scmp.eq.s32.totalorder %s134, 0
      %s137 = sadd.s32 %s136, 1
      %s138 = scalar_select %p135, %s136, %s137
      %p141 = pneg %p135
      %p142 = scmp.eq.s32.totalorder %s16, 1
      %p143 = por %p141, %p142
      %p144 = scmp.ne.s32.totalorder %s136, %s139
      %p145 = scmp.eq.s32.totalorder %s16, 0
      %p146 = por %p144, %p145
      %p147 = scmp.ne.s32.totalorder %s136, %s139
      %p148 = scmp.eq.s32.totalorder %s21, 1
      %p149 = por %p147, %p148
      %p150 = scmp.ne.s32.totalorder %s139, %s140
      %p151 = scmp.eq.s32.totalorder %s21, 0
      %p152 = por %p150, %p151
      %p153 = scmp.ne.s32.totalorder %s139, %s140
      %p154 = scmp.eq.s32.totalorder %s22, 1
      %p155 = por %p153, %p154
      %p157 = scmp.ne.s32.totalorder %s140, %s156
      %p158 = scmp.eq.s32.totalorder %s22, 0
      %p159 = por %p157, %p158
      %p160 = scmp.le.s32.totalorder 1, %s16
      %p161 = scmp.lt.s32.totalorder %s16, 3
      %p162 = pnand %p160, %p161
      %p163 = pneg %p162
      // Predicated region
      $region9: #{multi_head_attention.1} parent=5 // pred_check
        _
      $region10: #{multi_head_attention.1} parent=5 // pred_check_branch
        %165 = sbr.rel (%p162) target = $region12
      $region11: #{multi_head_attention.1} parent=5 // pred_region
        %s166 = ssub.s32 %s16, 1
        // Predicated region
        $region13: #{multi_head_attention.1} parent=11 // pred_check
          %p167 = pneg %p63
        $region14: #{multi_head_attention.1} parent=11 // pred_check_branch
          %169 = sbr.rel (%p167) target = $region16
        $region15: #{multi_head_attention.1} parent=11 // pred_region
          %s171 = ssub.s32 256, 256
          %172 = vsyncadd [#allocation5], %s171
          %s173 = sshll.u32 [#allocation4], 4
          %s174 = int_to_ptr.vmem [resolvable:$true] %s173
          %179 = dma.hbm_to_vmem [thread:$0]  %s1, 256, %s174, [#allocation5], 64, 64, 4
        $region16: #{multi_head_attention.1} parent=11 // pred_fallthru
          _
        // Predicated region
        $region17: #{multi_head_attention.1} parent=11 // pred_check
          %p180 = pneg %p84
        $region18: #{multi_head_attention.1} parent=11 // pred_check_branch
          %182 = sbr.rel (%p180) target = $region20
        $region19: #{multi_head_attention.1} parent=11 // pred_region
          %s184 = ssub.s32 128, 128
          %185 = vsyncadd [#allocation5], %s184
          %s187 = sshll.u32 [#allocation6], 4
          %s188 = int_to_ptr.vmem [resolvable:$true] %s187
          %190 = dma.hbm_to_vmem [thread:$0]  %s2, 128, %s188, [#allocation5]
        $region20: #{multi_head_attention.1} parent=11 // pred_fallthru
          _
        // Predicated region
        $region21: #{multi_head_attention.1} parent=11 // pred_check
          %p191 = pneg %p105
        $region22: #{multi_head_attention.1} parent=11 // pred_check_branch
          %193 = sbr.rel (%p191) target = $region24
        $region23: #{multi_head_attention.1} parent=11 // pred_region
          %s195 = ssub.s32 256, 256
          %196 = vsyncadd [#allocation8], %s195
          %s197 = sshll.u32 [#allocation7], 4
          %s198 = int_to_ptr.vmem [resolvable:$true] %s197
          %203 = dma.hbm_to_vmem [thread:$0]  %s3, 256, %s198, [#allocation8], 64, 64, 4
        $region24: #{multi_head_attention.1} parent=11 // pred_fallthru
          _
        // Predicated region
        $region25: #{multi_head_attention.1} parent=11 // pred_check
          %p204 = pneg %p126
        $region26: #{multi_head_attention.1} parent=11 // pred_check_branch
          %206 = sbr.rel (%p204) target = $region28
        $region27: #{multi_head_attention.1} parent=11 // pred_region
          _
        $region28: #{multi_head_attention.1} parent=11 // pred_fallthru
          _
      $region12: #{multi_head_attention.1} parent=5 // pred_fallthru
        _
      %p207 = scmp.lt.s32.totalorder %s16, 2
      // Predicated region
      $region29: #{multi_head_attention.1} parent=5 // pred_check
        %p208 = pneg %p207
      $region30: #{multi_head_attention.1} parent=5 // pred_check_branch
        %210 = sbr.rel (%p208) target = $region32
      $region31: #{multi_head_attention.1} parent=5 // pred_region
        // Predicated region
        $region33: #{multi_head_attention.1} parent=31 // pred_check
          %p211 = pneg %p36
        $region34: #{multi_head_attention.1} parent=31 // pred_check_branch
          %213 = sbr.rel (%p211) target = $region36
        $region35: #{multi_head_attention.1} parent=31 // pred_region
          %s214 = sand.u32 %s26, 1
          %s215 = scalar_lea.sflag [#allocation3], %s214
          %s216 = sand.u32 %s26, 1
          %s217 = smul.addr %s216, 8
          %s218 = scalar_lea.vmem [#allocation2], %s217
          %s220 = ssub.s32 128, 128
          %221 = vsyncadd %s215, %s220
          %s222 = smul.addr %s16, 128
          %s223 = scalar_lea.hbm %s0, %s222
          %s225 = sshll.u32 %s218, 4
          %s226 = int_to_ptr.vmem [resolvable:$true] %s225
          %228 = dma.hbm_to_vmem [thread:$0]  %s223, 128, %s226, %s215
        $region36: #{multi_head_attention.1} parent=31 // pred_fallthru
          _
      $region32: #{multi_head_attention.1} parent=5 // pred_fallthru
        _
      %p229 = scmp.le.s32.totalorder 1, %s16
      %p230 = scmp.lt.s32.totalorder %s16, 3
      %p231 = pnand %p229, %p230
      %p232 = pneg %p231
      // Predicated region
      $region37: #{multi_head_attention.1} parent=5 // pred_check
        _
      $region38: #{multi_head_attention.1} parent=5 // pred_check_branch
        %234 = sbr.rel (%p231) target = $region40
      $region39: #{multi_head_attention.1} parent=5 // pred_region
        %s235 = ssub.s32 %s16, 1
        %s236 = sand.u32 %s29, 1
        %s237 = scalar_lea.sflag [#allocation3], %s236
        %s238 = sand.u32 %s29, 1
        %s239 = smul.addr %s238, 8
        %s240 = scalar_lea.vmem [#allocation2], %s239
        // Predicated region
        $region41: #{multi_head_attention.1} parent=39 // pred_check
          %p241 = pneg %p42
        $region42: #{multi_head_attention.1} parent=39 // pred_check_branch
          %243 = sbr.rel (%p241) target = $region44
        $region43: #{multi_head_attention.1} parent=39 // pred_region
          %244 = dma.done %s237, 128
        $region44: #{multi_head_attention.1} parent=39 // pred_fallthru
          _
        // Predicated region
        $region45: #{multi_head_attention.1} parent=39 // pred_check
          %p245 = pneg %p63
        $region46: #{multi_head_attention.1} parent=39 // pred_check_branch
          %247 = sbr.rel (%p245) target = $region48
        $region47: #{multi_head_attention.1} parent=39 // pred_region
          %248 = dma.done [#allocation5], 256
        $region48: #{multi_head_attention.1} parent=39 // pred_fallthru
          _
        // Predicated region
        $region49: #{multi_head_attention.1} parent=39 // pred_check
          %p249 = pneg %p84
        $region50: #{multi_head_attention.1} parent=39 // pred_check_branch
          %251 = sbr.rel (%p249) target = $region52
        $region51: #{multi_head_attention.1} parent=39 // pred_region
          %252 = dma.done [#allocation5], 128
        $region52: #{multi_head_attention.1} parent=39 // pred_fallthru
          _
        // Predicated region
        $region53: #{multi_head_attention.1} parent=39 // pred_check
          %p253 = pneg %p105
        $region54: #{multi_head_attention.1} parent=39 // pred_check_branch
          %255 = sbr.rel (%p253) target = $region56
        $region55: #{multi_head_attention.1} parent=39 // pred_region
          %256 = dma.done [#allocation8], 256
        $region56: #{multi_head_attention.1} parent=39 // pred_fallthru
          _
        %s257 = sand.u32 %s29, 1
        %s258 = scalar_lea.sflag [#allocation3], %s257
        %s259 = sand.u32 %s29, 1
        %s260 = smul.addr %s259, 8
        %s261 = scalar_lea.vmem [#allocation2], %s260
        %p262 = pneg %p42
        %p263 = pneg %p39
        %p264 = pneg %p63
        %p265 = pneg %p60
        %p266 = pneg %p84
        %p267 = pneg %p81
        %p268 = pneg %p105
        %p269 = pneg %p102
        %p270 = pneg %p126
        %p271 = pneg %p123
        %p272 = pneg %p152
        %p273 = pneg %p149
        %p274 = scmp.lt.s32.totalorder %s21, 1
        %s275 = scalar_select %p274, %s21, 1
        %s276 = smul.addr %s275, 8
        %s277 = scalar_lea.vmem %s5, %s276
        %p278 = scmp.lt.s32.totalorder %s21, 1
        %s279 = scalar_select %p278, %s21, 1
        %s280 = smul.addr %s279, 8
        %s281 = scalar_lea.vmem %s5, %s280
        %v283 = vld [vmem:[%s240] sm:$0xff]
        %v284 = vpack.c.bf16 %v283, %v283
        %v285 = vld [vmem:[#allocation4] sm:$0xf]
        %v286 = vld [vmem:[#allocation4 + $0x4] sm:$0xf]
        %v287 = vld [vmem:[#allocation4 + $0x8] sm:$0xf]
        %v288 = vld [vmem:[#allocation4 + $0xc] sm:$0xf]
        %v293 = vunpack.c.l.b16 %v285
        %v294 = vunpack.c.l.b16 %v286
        %v295 = vunpack.c.l.b16 %v287
        %v296 = vunpack.c.l.b16 %v288
        %v297 = vpack.c.b16 %v294, %v293
        %v298 = vpack.c.b16 %v296, %v295
        %vm301 = vcmask 261120
        %v303 = vsel %vm301, %v284, 0
        %305 = vmatprep.subr.bf16.mxu0 0
        %306 = vmatpush1.bf16.msra.mxu0 %v297
        %307 = vmatprep.subr.bf16.mxu0 0
        %308 = vmatpush1.bf16.msra.mxu0 %v298
        %309 = vmatprep.subr.bf16.mxu0 0
        %310 = vmatpush1.bf16.msra.mxu0 0
        %311 = vmatprep.subr.bf16.mxu0 0
        %312 = vmatpush1.bf16.msra.mxu0 0
        %313 = vmatprep.subr.bf16.mxu0 0
        %314 = vmatpush1.bf16.msra.mxu0 0
        %315 = vmatprep.subr.bf16.mxu0 0
        %316 = vmatpush1.bf16.msra.mxu0 0
        %317 = vmatprep.subr.bf16.mxu0 0
        %318 = vmatpush1.bf16.msra.mxu0 0
        %319 = vmatprep.subr.bf16.mxu0 0
        %320 = vmatpush1.bf16.msra.mxu0 0
        %321 = vmatprep.subr.bf16.mxu0 0
        %322 = vmatpush1.bf16.msra.mxu0 0
        %323 = vmatprep.subr.bf16.mxu0 0
        %324 = vmatpush1.bf16.msra.mxu0 0
        %325 = vmatprep.subr.bf16.mxu0 0
        %326 = vmatpush1.bf16.msra.mxu0 0
        %327 = vmatprep.subr.bf16.mxu0 0
        %328 = vmatpush1.bf16.msra.mxu0 0
        %329 = vmatprep.subr.bf16.mxu0 0
        %330 = vmatpush1.bf16.msra.mxu0 0
        %331 = vmatprep.subr.bf16.mxu0 0
        %332 = vmatpush1.bf16.msra.mxu0 0
        %333 = vmatprep.subr.bf16.mxu0 0
        %334 = vmatpush1.bf16.msra.mxu0 0
        %335 = vmatprep.subr.bf16.mxu0 0
        %336 = vmatpush1.bf16.msra.mxu0 0
        %337 = vmatprep.mubr.bf16.mxu0 0
        %338 = vmatmul.mubr.bf16.gmra.mrb[0].mxu0 %v303
        %v339 = vpop.f32.mrb[0].mxu0
        %v340 = vadd.f32 0.0, %v339
        %v341 = vpop.f32.mrb[0].mxu0
        %v342 = vpop.f32.mrb[0].mxu0
        %v343 = vpop.f32.mrb[0].mxu0
        %344 = vdwg.mxu0
        %v345 = vpack.c.bf16 %v340, %v340
        %v346 = vld [vmem:[#allocation6] sm:$0xff]
        %v347 = vld [vmem:[#allocation7] sm:$0xf]
        %v348 = vld [vmem:[#allocation7 + $0x4] sm:$0xf]
        %v349 = vld [vmem:[#allocation7 + $0x8] sm:$0xf]
        %v350 = vld [vmem:[#allocation7 + $0xc] sm:$0xf]
        %v351 = vld [vmem:[%s4] sm:$0x1]
        %v353 = vlaneseq
        %v354 = vshrl.u32 %v353, 7
        %v355 = vsub.s32 0, %v354
        %v356 = vrot.slane %v351, %v355
        %359 = vrot.lane.b32.xlu0 %v345, 96
        %v360 = vpop.permute.xlu0 %359
        %vm361 = vcmask 64512
        %v363 = vsel %vm361, %v345, 0
        %v366 = vsel %vm361, %v360, 0
        %368 = vmatprep.subr.bf16.mxu0 0
        %369 = vmatpush1.bf16.xpose.msra.mxu0 %v366
        %370 = vmatprep.subr.bf16.mxu0 0
        %371 = vmatpush1.bf16.xpose.msra.mxu0 0
        %372 = vmatprep.subr.bf16.mxu0 0
        %373 = vmatpush1.bf16.xpose.msra.mxu0 0
        %374 = vmatprep.subr.bf16.mxu0 0
        %375 = vmatpush1.bf16.xpose.msra.mxu0 0
        %376 = vmatprep.subr.bf16.mxu0 0
        %377 = vmatpush1.bf16.xpose.msra.mxu0 0
        %378 = vmatprep.subr.bf16.mxu0 0
        %379 = vmatpush1.bf16.xpose.msra.mxu0 0
        %380 = vmatprep.subr.bf16.mxu0 0
        %381 = vmatpush1.bf16.xpose.msra.mxu0 0
        %382 = vmatprep.subr.bf16.mxu0 0
        %383 = vmatpush1.bf16.xpose.msra.mxu0 0
        %384 = vmatprep.subr.bf16.mxu0 0
        %385 = vmatpush1.bf16.xpose.msra.mxu0 0
        %386 = vmatprep.subr.bf16.mxu0 0
        %387 = vmatpush1.bf16.xpose.msra.mxu0 0
        %388 = vmatprep.subr.bf16.mxu0 0
        %389 = vmatpush1.bf16.xpose.msra.mxu0 0
        %390 = vmatprep.subr.bf16.mxu0 0
        %391 = vmatpush1.bf16.xpose.msra.mxu0 0
        %392 = vmatprep.subr.bf16.mxu0 0
        %393 = vmatpush1.bf16.xpose.msra.mxu0 0
        %394 = vmatprep.subr.bf16.mxu0 0
        %395 = vmatpush1.bf16.xpose.msra.mxu0 0
        %396 = vmatprep.subr.bf16.mxu0 0
        %397 = vmatpush1.bf16.xpose.msra.mxu0 0
        %398 = vmatprep.subr.bf16.mxu0 0
        %399 = vmatpush1.bf16.xpose.msra.mxu0 0
        %400 = vmatprep.mubr.bf16.mxu0 0
        %401 = vmatmul.mubr.bf16.gmra.mrb[0].mxu0 %v363
        %v402 = vpop.f32.mrb[0].mxu0
        %v403 = vadd.f32 %v346, %v402
        %v404 = vpop.f32.mrb[0].mxu0
        %v405 = vpop.f32.mrb[0].mxu0
        %v406 = vpop.f32.mrb[0].mxu0
        %407 = vdwg.mxu0
        %v408 = vsel %vm361, %v403, -inf
        %409 = vmax.xlane.f32.xlu0 %v408
        %v410 = vpop.xlane.xlu0 %409
        %v411 = vsub.f32 %v403, %v410
        %v412 = vmul.f32 %v411, 1.442695
        %v413 = vpow.pop %v412
        %v414 = vsel %vm361, %v413, 0.0
        %415 = vadd.xlane.f32.xlu0 %v414
        %v416 = vpop.xlane.xlu0 %415
        %v417 = vrcp.pop %v416
        %v418 = vmul.f32 %v413, %v417
        %v419 = vpack.c.bf16 %v418, %v418
        %420 = vrot.lane.b32.xlu0 %v345, 64
        %v421 = vpop.permute.xlu0 %420
        %v423 = vsel %vm361, %v419, 0
        %vm425 = vcmask 1043456
        %v427 = vsel %vm425, %v421, 0
        %429 = vmatprep.subr.bf16.mxu0 0
        %430 = vmatpush1.bf16.msra.mxu0 %v427
        %431 = vmatprep.subr.bf16.mxu0 0
        %432 = vmatpush1.bf16.msra.mxu0 0
        %433 = vmatprep.subr.bf16.mxu0 0
        %434 = vmatpush1.bf16.msra.mxu0 0
        %435 = vmatprep.subr.bf16.mxu0 0
        %436 = vmatpush1.bf16.msra.mxu0 0
        %437 = vmatprep.subr.bf16.mxu0 0
        %438 = vmatpush1.bf16.msra.mxu0 0
        %439 = vmatprep.subr.bf16.mxu0 0
        %440 = vmatpush1.bf16.msra.mxu0 0
        %441 = vmatprep.subr.bf16.mxu0 0
        %442 = vmatpush1.bf16.msra.mxu0 0
        %443 = vmatprep.subr.bf16.mxu0 0
        %444 = vmatpush1.bf16.msra.mxu0 0
        %445 = vmatprep.subr.bf16.mxu0 0
        %446 = vmatpush1.bf16.msra.mxu0 0
        %447 = vmatprep.subr.bf16.mxu0 0
        %448 = vmatpush1.bf16.msra.mxu0 0
        %449 = vmatprep.subr.bf16.mxu0 0
        %450 = vmatpush1.bf16.msra.mxu0 0
        %451 = vmatprep.subr.bf16.mxu0 0
        %452 = vmatpush1.bf16.msra.mxu0 0
        %453 = vmatprep.subr.bf16.mxu0 0
        %454 = vmatpush1.bf16.msra.mxu0 0
        %455 = vmatprep.subr.bf16.mxu0 0
        %456 = vmatpush1.bf16.msra.mxu0 0
        %457 = vmatprep.subr.bf16.mxu0 0
        %458 = vmatpush1.bf16.msra.mxu0 0
        %459 = vmatprep.subr.bf16.mxu0 0
        %460 = vmatpush1.bf16.msra.mxu0 0
        %461 = vmatprep.mubr.bf16.mxu0 0
        %462 = vmatmul.mubr.bf16.gmra.mrb[0].mxu0 %v423
        %v463 = vpop.f32.mrb[0].mxu0
        %v464 = vadd.f32 0.0, %v463
        %v465 = vpop.f32.mrb[0].mxu0
        %v466 = vpop.f32.mrb[0].mxu0
        %v467 = vpop.f32.mrb[0].mxu0
        %468 = vdwg.mxu0
        %v469 = vpack.c.bf16 %v464, %v464
        %v471 = vsel %vm361, %v469, 0
        %v474 = vsel %vm425, %v347, 0
        %476 = vmatprep.subr.bf16.mxu0 0
        %477 = vmatpush1.bf16.msra.mxu0 %v474
        %478 = vmatprep.subr.bf16.mxu0 0
        %479 = vmatpush1.bf16.msra.mxu0 0
        %480 = vmatprep.subr.bf16.mxu0 0
        %481 = vmatpush1.bf16.msra.mxu0 0
        %482 = vmatprep.subr.bf16.mxu0 0
        %483 = vmatpush1.bf16.msra.mxu0 0
        %484 = vmatprep.subr.bf16.mxu0 0
        %485 = vmatpush1.bf16.msra.mxu0 0
        %486 = vmatprep.subr.bf16.mxu0 0
        %487 = vmatpush1.bf16.msra.mxu0 0
        %488 = vmatprep.subr.bf16.mxu0 0
        %489 = vmatpush1.bf16.msra.mxu0 0
        %490 = vmatprep.subr.bf16.mxu0 0
        %491 = vmatpush1.bf16.msra.mxu0 0
        %492 = vmatprep.subr.bf16.mxu0 0
        %493 = vmatpush1.bf16.msra.mxu0 0
        %494 = vmatprep.subr.bf16.mxu0 0
        %495 = vmatpush1.bf16.msra.mxu0 0
        %496 = vmatprep.subr.bf16.mxu0 0
        %497 = vmatpush1.bf16.msra.mxu0 0
        %498 = vmatprep.subr.bf16.mxu0 0
        %499 = vmatpush1.bf16.msra.mxu0 0
        %500 = vmatprep.subr.bf16.mxu0 0
        %501 = vmatpush1.bf16.msra.mxu0 0
        %502 = vmatprep.subr.bf16.mxu0 0
        %503 = vmatpush1.bf16.msra.mxu0 0
        %504 = vmatprep.subr.bf16.mxu0 0
        %505 = vmatpush1.bf16.msra.mxu0 0
        %506 = vmatprep.subr.bf16.mxu0 0
        %507 = vmatpush1.bf16.msra.mxu0 0
        %508 = vmatprep.mubr.bf16.mxu0 0
        %509 = vmatmul.mubr.bf16.gmra.mrb[0].mxu0 %v471
        %v510 = vpop.f32.mrb[0].mxu0
        %v511 = vadd.f32 0.0, %v510
        %v512 = vpop.f32.mrb[0].mxu0
        %v513 = vpop.f32.mrb[0].mxu0
        %v514 = vpop.f32.mrb[0].mxu0
        %515 = vdwg.mxu0
        %v516 = vadd.f32 %v356, %v511
        %517 = vrot.lane.b32.xlu0 %v345, 120
        %v518 = vpop.permute.xlu0 %517
        %519 = vrot.lane.b32.xlu0 %v345, 88
        %v520 = vpop.permute.xlu0 %519
        %v522 = vsel %vm361, %v518, 0
        %v525 = vsel %vm361, %v520, 0
        %527 = vmatprep.subr.bf16.mxu0 0
        %528 = vmatpush1.bf16.xpose.msra.mxu0 %v525
        %529 = vmatprep.subr.bf16.mxu0 0
        %530 = vmatpush1.bf16.xpose.msra.mxu0 0
        %531 = vmatprep.subr.bf16.mxu0 0
        %532 = vmatpush1.bf16.xpose.msra.mxu0 0
        %533 = vmatprep.subr.bf16.mxu0 0
        %534 = vmatpush1.bf16.xpose.msra.mxu0 0
        %535 = vmatprep.subr.bf16.mxu0 0
        %536 = vmatpush1.bf16.xpose.msra.mxu0 0
        %537 = vmatprep.subr.bf16.mxu0 0
        %538 = vmatpush1.bf16.xpose.msra.mxu0 0
        %539 = vmatprep.subr.bf16.mxu0 0
        %540 = vmatpush1.bf16.xpose.msra.mxu0 0
        %541 = vmatprep.subr.bf16.mxu0 0
        %542 = vmatpush1.bf16.xpose.msra.mxu0 0
        %543 = vmatprep.subr.bf16.mxu0 0
        %544 = vmatpush1.bf16.xpose.msra.mxu0 0
        %545 = vmatprep.subr.bf16.mxu0 0
        %546 = vmatpush1.bf16.xpose.msra.mxu0 0
        %547 = vmatprep.subr.bf16.mxu0 0
        %548 = vmatpush1.bf16.xpose.msra.mxu0 0
        %549 = vmatprep.subr.bf16.mxu0 0
        %550 = vmatpush1.bf16.xpose.msra.mxu0 0
        %551 = vmatprep.subr.bf16.mxu0 0
        %552 = vmatpush1.bf16.xpose.msra.mxu0 0
        %553 = vmatprep.subr.bf16.mxu0 0
        %554 = vmatpush1.bf16.xpose.msra.mxu0 0
        %555 = vmatprep.subr.bf16.mxu0 0
        %556 = vmatpush1.bf16.xpose.msra.mxu0 0
        %557 = vmatprep.subr.bf16.mxu0 0
        %558 = vmatpush1.bf16.xpose.msra.mxu0 0
        %559 = vmatprep.mubr.bf16.mxu0 0
        %560 = vmatmul.mubr.bf16.gmra.mrb[0].mxu0 %v522
        %v561 = vpop.f32.mrb[0].mxu0
        %v562 = vadd.f32 %v346, %v561
        %v563 = vpop.f32.mrb[0].mxu0
        %v564 = vpop.f32.mrb[0].mxu0
        %v565 = vpop.f32.mrb[0].mxu0
        %566 = vdwg.mxu0
        %v567 = vsel %vm361, %v562, -inf
        %568 = vmax.xlane.f32.xlu0 %v567
        %v569 = vpop.xlane.xlu0 %568
        %v570 = vsub.f32 %v562, %v569
        %v571 = vmul.f32 %v570, 1.442695
        %v572 = vpow.pop %v571
        %v573 = vsel %vm361, %v572, 0.0
        %574 = vadd.xlane.f32.xlu0 %v573
        %v575 = vpop.xlane.xlu0 %574
        %v576 = vrcp.pop %v575
        %v577 = vmul.f32 %v572, %v576
        %v578 = vpack.c.bf16 %v577, %v577
        %579 = vrot.lane.b32.xlu0 %v345, 56
        %v580 = vpop.permute.xlu0 %579
        %v582 = vsel %vm361, %v578, 0
        %v585 = vsel %vm425, %v580, 0
        %587 = vmatprep.subr.bf16.mxu0 0
        %588 = vmatpush1.bf16.msra.mxu0 %v585
        %589 = vmatprep.subr.bf16.mxu0 0
        %590 = vmatpush1.bf16.msra.mxu0 0
        %591 = vmatprep.subr.bf16.mxu0 0
        %592 = vmatpush1.bf16.msra.mxu0 0
        %593 = vmatprep.subr.bf16.mxu0 0
        %594 = vmatpush1.bf16.msra.mxu0 0
        %595 = vmatprep.subr.bf16.mxu0 0
        %596 = vmatpush1.bf16.msra.mxu0 0
        %597 = vmatprep.subr.bf16.mxu0 0
        %598 = vmatpush1.bf16.msra.mxu0 0
        %599 = vmatprep.subr.bf16.mxu0 0
        %600 = vmatpush1.bf16.msra.mxu0 0
        %601 = vmatprep.subr.bf16.mxu0 0
        %602 = vmatpush1.bf16.msra.mxu0 0
        %603 = vmatprep.subr.bf16.mxu0 0
        %604 = vmatpush1.bf16.msra.mxu0 0
        %605 = vmatprep.subr.bf16.mxu0 0
        %606 = vmatpush1.bf16.msra.mxu0 0
        %607 = vmatprep.subr.bf16.mxu0 0
        %608 = vmatpush1.bf16.msra.mxu0 0
        %609 = vmatprep.subr.bf16.mxu0 0
        %610 = vmatpush1.bf16.msra.mxu0 0
        %611 = vmatprep.subr.bf16.mxu0 0
        %612 = vmatpush1.bf16.msra.mxu0 0
        %613 = vmatprep.subr.bf16.mxu0 0
        %614 = vmatpush1.bf16.msra.mxu0 0
        %615 = vmatprep.subr.bf16.mxu0 0
        %616 = vmatpush1.bf16.msra.mxu0 0
        %617 = vmatprep.subr.bf16.mxu0 0
        %618 = vmatpush1.bf16.msra.mxu0 0
        %619 = vmatprep.mubr.bf16.mxu0 0
        %620 = vmatmul.mubr.bf16.gmra.mrb[0].mxu0 %v582
        %v621 = vpop.f32.mrb[0].mxu0
        %v622 = vadd.f32 0.0, %v621
        %v623 = vpop.f32.mrb[0].mxu0
        %v624 = vpop.f32.mrb[0].mxu0
        %v625 = vpop.f32.mrb[0].mxu0
        %626 = vdwg.mxu0
        %v627 = vpack.c.bf16 %v622, %v622
        %v629 = vsel %vm361, %v627, 0
        %v632 = vsel %vm425, %v348, 0
        %634 = vmatprep.subr.bf16.mxu0 0
        %635 = vmatpush1.bf16.msra.mxu0 %v632
        %636 = vmatprep.subr.bf16.mxu0 0
        %637 = vmatpush1.bf16.msra.mxu0 0
        %638 = vmatprep.subr.bf16.mxu0 0
        %639 = vmatpush1.bf16.msra.mxu0 0
        %640 = vmatprep.subr.bf16.mxu0 0
        %641 = vmatpush1.bf16.msra.mxu0 0
        %642 = vmatprep.subr.bf16.mxu0 0
        %643 = vmatpush1.bf16.msra.mxu0 0
        %644 = vmatprep.subr.bf16.mxu0 0
        %645 = vmatpush1.bf16.msra.mxu0 0
        %646 = vmatprep.subr.bf16.mxu0 0
        %647 = vmatpush1.bf16.msra.mxu0 0
        %648 = vmatprep.subr.bf16.mxu0 0
        %649 = vmatpush1.bf16.msra.mxu0 0
        %650 = vmatprep.subr.bf16.mxu0 0
        %651 = vmatpush1.bf16.msra.mxu0 0
        %652 = vmatprep.subr.bf16.mxu0 0
        %653 = vmatpush1.bf16.msra.mxu0 0
        %654 = vmatprep.subr.bf16.mxu0 0
        %655 = vmatpush1.bf16.msra.mxu0 0
        %656 = vmatprep.subr.bf16.mxu0 0
        %657 = vmatpush1.bf16.msra.mxu0 0
        %658 = vmatprep.subr.bf16.mxu0 0
        %659 = vmatpush1.bf16.msra.mxu0 0
        %660 = vmatprep.subr.bf16.mxu0 0
        %661 = vmatpush1.bf16.msra.mxu0 0
        %662 = vmatprep.subr.bf16.mxu0 0
        %663 = vmatpush1.bf16.msra.mxu0 0
        %664 = vmatprep.subr.bf16.mxu0 0
        %665 = vmatpush1.bf16.msra.mxu0 0
        %666 = vmatprep.mubr.bf16.mxu0 0
        %667 = vmatmul.mubr.bf16.gmra.mrb[0].mxu0 %v629
        %v668 = vpop.f32.mrb[0].mxu0
        %v669 = vadd.f32 0.0, %v668
        %v670 = vpop.f32.mrb[0].mxu0
        %v671 = vpop.f32.mrb[0].mxu0
        %v672 = vpop.f32.mrb[0].mxu0
        %673 = vdwg.mxu0
        %v674 = vadd.f32 %v516, %v669
        %675 = vrot.lane.b32.xlu0 %v345, 112
        %v676 = vpop.permute.xlu0 %675
        %677 = vrot.lane.b32.xlu0 %v345, 80
        %v678 = vpop.permute.xlu0 %677
        %v680 = vsel %vm361, %v676, 0
        %v683 = vsel %vm361, %v678, 0
        %685 = vmatprep.subr.bf16.mxu0 0
        %686 = vmatpush1.bf16.xpose.msra.mxu0 %v683
        %687 = vmatprep.subr.bf16.mxu0 0
        %688 = vmatpush1.bf16.xpose.msra.mxu0 0
        %689 = vmatprep.subr.bf16.mxu0 0
        %690 = vmatpush1.bf16.xpose.msra.mxu0 0
        %691 = vmatprep.subr.bf16.mxu0 0
        %692 = vmatpush1.bf16.xpose.msra.mxu0 0
        %693 = vmatprep.subr.bf16.mxu0 0
        %694 = vmatpush1.bf16.xpose.msra.mxu0 0
        %695 = vmatprep.subr.bf16.mxu0 0
        %696 = vmatpush1.bf16.xpose.msra.mxu0 0
        %697 = vmatprep.subr.bf16.mxu0 0
        %698 = vmatpush1.bf16.xpose.msra.mxu0 0
        %699 = vmatprep.subr.bf16.mxu0 0
        %700 = vmatpush1.bf16.xpose.msra.mxu0 0
        %701 = vmatprep.subr.bf16.mxu0 0
        %702 = vmatpush1.bf16.xpose.msra.mxu0 0
        %703 = vmatprep.subr.bf16.mxu0 0
        %704 = vmatpush1.bf16.xpose.msra.mxu0 0
        %705 = vmatprep.subr.bf16.mxu0 0
        %706 = vmatpush1.bf16.xpose.msra.mxu0 0
        %707 = vmatprep.subr.bf16.mxu0 0
        %708 = vmatpush1.bf16.xpose.msra.mxu0 0
        %709 = vmatprep.subr.bf16.mxu0 0
        %710 = vmatpush1.bf16.xpose.msra.mxu0 0
        %711 = vmatprep.subr.bf16.mxu0 0
        %712 = vmatpush1.bf16.xpose.msra.mxu0 0
        %713 = vmatprep.subr.bf16.mxu0 0
        %714 = vmatpush1.bf16.xpose.msra.mxu0 0
        %715 = vmatprep.subr.bf16.mxu0 0
        %716 = vmatpush1.bf16.xpose.msra.mxu0 0
        %717 = vmatprep.mubr.bf16.mxu0 0
        %718 = vmatmul.mubr.bf16.gmra.mrb[0].mxu0 %v680
        %v719 = vpop.f32.mrb[0].mxu0
        %v720 = vadd.f32 %v346, %v719
        %v721 = vpop.f32.mrb[0].mxu0
        %v722 = vpop.f32.mrb[0].mxu0
        %v723 = vpop.f32.mrb[0].mxu0
        %724 = vdwg.mxu0
        %v725 = vsel %vm361, %v720, -inf
        %726 = vmax.xlane.f32.xlu0 %v725
        %v727 = vpop.xlane.xlu0 %726
        %v728 = vsub.f32 %v720, %v727
        %v729 = vmul.f32 %v728, 1.442695
        %v730 = vpow.pop %v729
        %v731 = vsel %vm361, %v730, 0.0
        %732 = vadd.xlane.f32.xlu0 %v731
        %v733 = vpop.xlane.xlu0 %732
        %v734 = vrcp.pop %v733
        %v735 = vmul.f32 %v730, %v734
        %v736 = vpack.c.bf16 %v735, %v735
        %737 = vrot.lane.b32.xlu0 %v345, 48
        %v738 = vpop.permute.xlu0 %737
        %v740 = vsel %vm361, %v736, 0
        %v743 = vsel %vm425, %v738, 0
        %745 = vmatprep.subr.bf16.mxu0 0
        %746 = vmatpush1.bf16.msra.mxu0 %v743
        %747 = vmatprep.subr.bf16.mxu0 0
        %748 = vmatpush1.bf16.msra.mxu0 0
        %749 = vmatprep.subr.bf16.mxu0 0
        %750 = vmatpush1.bf16.msra.mxu0 0
        %751 = vmatprep.subr.bf16.mxu0 0
        %752 = vmatpush1.bf16.msra.mxu0 0
        %753 = vmatprep.subr.bf16.mxu0 0
        %754 = vmatpush1.bf16.msra.mxu0 0
        %755 = vmatprep.subr.bf16.mxu0 0
        %756 = vmatpush1.bf16.msra.mxu0 0
        %757 = vmatprep.subr.bf16.mxu0 0
        %758 = vmatpush1.bf16.msra.mxu0 0
        %759 = vmatprep.subr.bf16.mxu0 0
        %760 = vmatpush1.bf16.msra.mxu0 0
        %761 = vmatprep.subr.bf16.mxu0 0
        %762 = vmatpush1.bf16.msra.mxu0 0
        %763 = vmatprep.subr.bf16.mxu0 0
        %764 = vmatpush1.bf16.msra.mxu0 0
        %765 = vmatprep.subr.bf16.mxu0 0
        %766 = vmatpush1.bf16.msra.mxu0 0
        %767 = vmatprep.subr.bf16.mxu0 0
        %768 = vmatpush1.bf16.msra.mxu0 0
        %769 = vmatprep.subr.bf16.mxu0 0
        %770 = vmatpush1.bf16.msra.mxu0 0
        %771 = vmatprep.subr.bf16.mxu0 0
        %772 = vmatpush1.bf16.msra.mxu0 0
        %773 = vmatprep.subr.bf16.mxu0 0
        %774 = vmatpush1.bf16.msra.mxu0 0
        %775 = vmatprep.subr.bf16.mxu0 0
        %776 = vmatpush1.bf16.msra.mxu0 0
        %777 = vmatprep.mubr.bf16.mxu0 0
        %778 = vmatmul.mubr.bf16.gmra.mrb[0].mxu0 %v740
        %v779 = vpop.f32.mrb[0].mxu0
        %v780 = vadd.f32 0.0, %v779
        %v781 = vpop.f32.mrb[0].mxu0
        %v782 = vpop.f32.mrb[0].mxu0
        %v783 = vpop.f32.mrb[0].mxu0
        %784 = vdwg.mxu0
        %v785 = vpack.c.bf16 %v780, %v780
        %v787 = vsel %vm361, %v785, 0
        %v790 = vsel %vm425, %v349, 0
        %792 = vmatprep.subr.bf16.mxu0 0
        %793 = vmatpush1.bf16.msra.mxu0 %v790
        %794 = vmatprep.subr.bf16.mxu0 0
        %795 = vmatpush1.bf16.msra.mxu0 0
        %796 = vmatprep.subr.bf16.mxu0 0
        %797 = vmatpush1.bf16.msra.mxu0 0
        %798 = vmatprep.subr.bf16.mxu0 0
        %799 = vmatpush1.bf16.msra.mxu0 0
        %800 = vmatprep.subr.bf16.mxu0 0
        %801 = vmatpush1.bf16.msra.mxu0 0
        %802 = vmatprep.subr.bf16.mxu0 0
        %803 = vmatpush1.bf16.msra.mxu0 0
        %804 = vmatprep.subr.bf16.mxu0 0
        %805 = vmatpush1.bf16.msra.mxu0 0
        %806 = vmatprep.subr.bf16.mxu0 0
        %807 = vmatpush1.bf16.msra.mxu0 0
        %808 = vmatprep.subr.bf16.mxu0 0
        %809 = vmatpush1.bf16.msra.mxu0 0
        %810 = vmatprep.subr.bf16.mxu0 0
        %811 = vmatpush1.bf16.msra.mxu0 0
        %812 = vmatprep.subr.bf16.mxu0 0
        %813 = vmatpush1.bf16.msra.mxu0 0
        %814 = vmatprep.subr.bf16.mxu0 0
        %815 = vmatpush1.bf16.msra.mxu0 0
        %816 = vmatprep.subr.bf16.mxu0 0
        %817 = vmatpush1.bf16.msra.mxu0 0
        %818 = vmatprep.subr.bf16.mxu0 0
        %819 = vmatpush1.bf16.msra.mxu0 0
        %820 = vmatprep.subr.bf16.mxu0 0
        %821 = vmatpush1.bf16.msra.mxu0 0
        %822 = vmatprep.subr.bf16.mxu0 0
        %823 = vmatpush1.bf16.msra.mxu0 0
        %824 = vmatprep.mubr.bf16.mxu0 0
        %825 = vmatmul.mubr.bf16.gmra.mrb[0].mxu0 %v787
        %v826 = vpop.f32.mrb[0].mxu0
        %v827 = vadd.f32 0.0, %v826
        %v828 = vpop.f32.mrb[0].mxu0
        %v829 = vpop.f32.mrb[0].mxu0
        %v830 = vpop.f32.mrb[0].mxu0
        %831 = vdwg.mxu0
        %v832 = vadd.f32 %v674, %v827
        %833 = vrot.lane.b32.xlu0 %v345, 104
        %v834 = vpop.permute.xlu0 %833
        %835 = vrot.lane.b32.xlu0 %v345, 72
        %v836 = vpop.permute.xlu0 %835
        %v838 = vsel %vm361, %v834, 0
        %v841 = vsel %vm361, %v836, 0
        %843 = vmatprep.subr.bf16.mxu0 0
        %844 = vmatpush1.bf16.xpose.msra.mxu0 %v841
        %845 = vmatprep.subr.bf16.mxu0 0
        %846 = vmatpush1.bf16.xpose.msra.mxu0 0
        %847 = vmatprep.subr.bf16.mxu0 0
        %848 = vmatpush1.bf16.xpose.msra.mxu0 0
        %849 = vmatprep.subr.bf16.mxu0 0
        %850 = vmatpush1.bf16.xpose.msra.mxu0 0
        %851 = vmatprep.subr.bf16.mxu0 0
        %852 = vmatpush1.bf16.xpose.msra.mxu0 0
        %853 = vmatprep.subr.bf16.mxu0 0
        %854 = vmatpush1.bf16.xpose.msra.mxu0 0
        %855 = vmatprep.subr.bf16.mxu0 0
        %856 = vmatpush1.bf16.xpose.msra.mxu0 0
        %857 = vmatprep.subr.bf16.mxu0 0
        %858 = vmatpush1.bf16.xpose.msra.mxu0 0
        %859 = vmatprep.subr.bf16.mxu0 0
        %860 = vmatpush1.bf16.xpose.msra.mxu0 0
        %861 = vmatprep.subr.bf16.mxu0 0
        %862 = vmatpush1.bf16.xpose.msra.mxu0 0
        %863 = vmatprep.subr.bf16.mxu0 0
        %864 = vmatpush1.bf16.xpose.msra.mxu0 0
        %865 = vmatprep.subr.bf16.mxu0 0
        %866 = vmatpush1.bf16.xpose.msra.mxu0 0
        %867 = vmatprep.subr.bf16.mxu0 0
        %868 = vmatpush1.bf16.xpose.msra.mxu0 0
        %869 = vmatprep.subr.bf16.mxu0 0
        %870 = vmatpush1.bf16.xpose.msra.mxu0 0
        %871 = vmatprep.subr.bf16.mxu0 0
        %872 = vmatpush1.bf16.xpose.msra.mxu0 0
        %873 = vmatprep.subr.bf16.mxu0 0
        %874 = vmatpush1.bf16.xpose.msra.mxu0 0
        %875 = vmatprep.mubr.bf16.mxu0 0
        %876 = vmatmul.mubr.bf16.gmra.mrb[0].mxu0 %v838
        %v877 = vpop.f32.mrb[0].mxu0
        %v878 = vadd.f32 %v346, %v877
        %v879 = vpop.f32.mrb[0].mxu0
        %v880 = vpop.f32.mrb[0].mxu0
        %v881 = vpop.f32.mrb[0].mxu0
        %882 = vdwg.mxu0
        %v883 = vsel %vm361, %v878, -inf
        %884 = vmax.xlane.f32.xlu0 %v883
        %v885 = vpop.xlane.xlu0 %884
        %v886 = vsub.f32 %v878, %v885
        %v887 = vmul.f32 %v886, 1.442695
        %v888 = vpow.pop %v887
        %v889 = vsel %vm361, %v888, 0.0
        %890 = vadd.xlane.f32.xlu0 %v889
        %v891 = vpop.xlane.xlu0 %890
        %v892 = vrcp.pop %v891
        %v893 = vmul.f32 %v888, %v892
        %v894 = vpack.c.bf16 %v893, %v893
        %895 = vrot.lane.b32.xlu0 %v345, 40
        %v896 = vpop.permute.xlu0 %895
        %v898 = vsel %vm361, %v894, 0
        %v901 = vsel %vm425, %v896, 0
        %903 = vmatprep.subr.bf16.mxu0 0
        %904 = vmatpush1.bf16.msra.mxu0 %v901
        %905 = vmatprep.subr.bf16.mxu0 0
        %906 = vmatpush1.bf16.msra.mxu0 0
        %907 = vmatprep.subr.bf16.mxu0 0
        %908 = vmatpush1.bf16.msra.mxu0 0
        %909 = vmatprep.subr.bf16.mxu0 0
        %910 = vmatpush1.bf16.msra.mxu0 0
        %911 = vmatprep.subr.bf16.mxu0 0
        %912 = vmatpush1.bf16.msra.mxu0 0
        %913 = vmatprep.subr.bf16.mxu0 0
        %914 = vmatpush1.bf16.msra.mxu0 0
        %915 = vmatprep.subr.bf16.mxu0 0
        %916 = vmatpush1.bf16.msra.mxu0 0
        %917 = vmatprep.subr.bf16.mxu0 0
        %918 = vmatpush1.bf16.msra.mxu0 0
        %919 = vmatprep.subr.bf16.mxu0 0
        %920 = vmatpush1.bf16.msra.mxu0 0
        %921 = vmatprep.subr.bf16.mxu0 0
        %922 = vmatpush1.bf16.msra.mxu0 0
        %923 = vmatprep.subr.bf16.mxu0 0
        %924 = vmatpush1.bf16.msra.mxu0 0
        %925 = vmatprep.subr.bf16.mxu0 0
        %926 = vmatpush1.bf16.msra.mxu0 0
        %927 = vmatprep.subr.bf16.mxu0 0
        %928 = vmatpush1.bf16.msra.mxu0 0
        %929 = vmatprep.subr.bf16.mxu0 0
        %930 = vmatpush1.bf16.msra.mxu0 0
        %931 = vmatprep.subr.bf16.mxu0 0
        %932 = vmatpush1.bf16.msra.mxu0 0
        %933 = vmatprep.subr.bf16.mxu0 0
        %934 = vmatpush1.bf16.msra.mxu0 0
        %935 = vmatprep.mubr.bf16.mxu0 0
        %936 = vmatmul.mubr.bf16.gmra.mrb[0].mxu0 %v898
        %v937 = vpop.f32.mrb[0].mxu0
        %v938 = vadd.f32 0.0, %v937
        %v939 = vpop.f32.mrb[0].mxu0
        %v940 = vpop.f32.mrb[0].mxu0
        %v941 = vpop.f32.mrb[0].mxu0
        %942 = vdwg.mxu0
        %v943 = vpack.c.bf16 %v938, %v938
        %v945 = vsel %vm361, %v943, 0
        %v948 = vsel %vm425, %v350, 0
        %950 = vmatprep.subr.bf16.mxu0 0
        %951 = vmatpush1.bf16.msra.mxu0 %v948
        %952 = vmatprep.subr.bf16.mxu0 0
        %953 = vmatpush1.bf16.msra.mxu0 0
        %954 = vmatprep.subr.bf16.mxu0 0
        %955 = vmatpush1.bf16.msra.mxu0 0
        %956 = vmatprep.subr.bf16.mxu0 0
        %957 = vmatpush1.bf16.msra.mxu0 0
        %958 = vmatprep.subr.bf16.mxu0 0
        %959 = vmatpush1.bf16.msra.mxu0 0
        %960 = vmatprep.subr.bf16.mxu0 0
        %961 = vmatpush1.bf16.msra.mxu0 0
        %962 = vmatprep.subr.bf16.mxu0 0
        %963 = vmatpush1.bf16.msra.mxu0 0
        %964 = vmatprep.subr.bf16.mxu0 0
        %965 = vmatpush1.bf16.msra.mxu0 0
        %966 = vmatprep.subr.bf16.mxu0 0
        %967 = vmatpush1.bf16.msra.mxu0 0
        %968 = vmatprep.subr.bf16.mxu0 0
        %969 = vmatpush1.bf16.msra.mxu0 0
        %970 = vmatprep.subr.bf16.mxu0 0
        %971 = vmatpush1.bf16.msra.mxu0 0
        %972 = vmatprep.subr.bf16.mxu0 0
        %973 = vmatpush1.bf16.msra.mxu0 0
        %974 = vmatprep.subr.bf16.mxu0 0
        %975 = vmatpush1.bf16.msra.mxu0 0
        %976 = vmatprep.subr.bf16.mxu0 0
        %977 = vmatpush1.bf16.msra.mxu0 0
        %978 = vmatprep.subr.bf16.mxu0 0
        %979 = vmatpush1.bf16.msra.mxu0 0
        %980 = vmatprep.subr.bf16.mxu0 0
        %981 = vmatpush1.bf16.msra.mxu0 0
        %982 = vmatprep.mubr.bf16.mxu0 0
        %983 = vmatmul.mubr.bf16.gmra.mrb[0].mxu0 %v945
        %v984 = vpop.f32.mrb[0].mxu0
        %v985 = vadd.f32 0.0, %v984
        %v986 = vpop.f32.mrb[0].mxu0
        %v987 = vpop.f32.mrb[0].mxu0
        %v988 = vpop.f32.mrb[0].mxu0
        %989 = vdwg.mxu0
        %v990 = vadd.f32 %v832, %v985
        %991 = vst [vmem:[%s281] sm:$0xff] %v990
        %p992 = scmp.lt.s32.totalorder %s21, 1
        %s993 = scalar_select %p992, %s21, 1
        %s994 = smul.addr %s993, 8
        %s995 = scalar_lea.vmem %s5, %s994
        // Predicated region
        $region57: #{multi_head_attention.1} parent=39 // pred_check
          %p996 = pneg %p149
        $region58: #{multi_head_attention.1} parent=39 // pred_check_branch
          %998 = sbr.rel (%p996) target = $region60
        $region59: #{multi_head_attention.1} parent=39 // pred_region
          _
        $region60: #{multi_head_attention.1} parent=39 // pred_fallthru
          _
      $region40: #{multi_head_attention.1} parent=5 // pred_fallthru
        _
      %p999 = scmp.le.s32.totalorder 2, %s16
      // Predicated region
      $region61: #{multi_head_attention.1} parent=5 // pred_check
        %p1000 = pneg %p999
      $region62: #{multi_head_attention.1} parent=5 // pred_check_branch
        %1002 = sbr.rel (%p1000) target = $region64
      $region63: #{multi_head_attention.1} parent=5 // pred_region
        %s1003 = ssub.s32 %s16, 2
        // Predicated region
        $region65: #{multi_head_attention.1} parent=63 // pred_check
          %p1004 = pneg %p155
        $region66: #{multi_head_attention.1} parent=63 // pred_check_branch
          %1006 = sbr.rel (%p1004) target = $region68
        $region67: #{multi_head_attention.1} parent=63 // pred_region
          %p1007 = scmp.lt.s32.totalorder %s22, 1
          %s1008 = scalar_select %p1007, %s22, 1
          %s1009 = smul.addr %s1008, 8
          %s1010 = scalar_lea.vmem %s5, %s1009
        $region68: #{multi_head_attention.1} parent=63 // pred_fallthru
          _
      $region64: #{multi_head_attention.1} parent=5 // pred_fallthru
        _
    $region6: #{multi_head_attention.1} parent=1 // loop_footer
      %s20 = sadd.s32 1, %s16
    $region7: #{multi_head_attention.1} parent=1 // loop_footer_branch
      %15 = sbr.rel target = $region3
    $region8: #{multi_head_attention.1} parent=1 // loop_exit
      _
    %1011 = vsyncpa [#allocation3], 1
    %s1012 = scalar_lea.sflag [#allocation3], 1
    %1013 = vsyncpa %s1012, 1
    %1014 = vsyncpa [#allocation5], 1
    %1015 = vsyncpa [#allocation8], 1

</llo_original>
